<compile_context>
chip_gen: v6e
topology: v6e:2x2x1
jax: 0.10.0
libtpu: 0.0.40
codegen_flags: <defaults>
</compile_context>

<pallas_src>
import jax
import jax.numpy as jnp
from jax.experimental import pallas as pl
from jax.experimental.pallas import tpu as pltpu


def _round_up(n, m):
    return ((n + m - 1) // m) * m


def _choose_tile_m(M, tile_m):
    """Pick a row tile (multiple of 16 for bf16 sublane packing).  For M > 64
    cap the tile at ~half the rows so the grid has >= 2 steps (keeps both
    TensorCores busy on v7x); v5e/v6e are unaffected."""
    Mp0 = _round_up(M, 16)
    cap = Mp0 if M <= 64 else _round_up(pl.cdiv(Mp0, 2), 16)
    tm = _round_up(min(tile_m, cap), 16)
    Mp = _round_up(Mp0, tm)
    return tm, Mp


def _gating_kernel(y_ref, x_ref, wy_ref, wx_ref, ug_ref, b_ref, o_ref):
    """One row-tile of the fused gating.

    y_ref  : (tm, D)      bf16  -- y rows (unpadded K)
    x_ref  : (tm, D)      f32   -- x rows, exact for the (1-z)*x path
    wy_ref : (D, 3*Dp)    bf16  -- [Wr | Wz | Wg], each padded to Dp columns
    wx_ref : (D, 2*Dp)    bf16  -- [Ur | Uz]
    ug_ref : (D, Dp)      bf16  -- Ug (padded output columns)
    b_ref  : (1, 3*Dp)    f32   -- [br+cr | bz+cz-bg | bgw+cg] (padded)
    o_ref  : (tm, D)      f32/bf16
    """
    D = y_ref.shape[-1]          # 192 (real feature width)
    Dp = ug_ref.shape[-1]        # 256 (lane-aligned per-gate width)

    x = x_ref[...]                               # f32
    x_bf = x.astype(jnp.bfloat16)

    # Two MXU matmuls with f32 accumulation (K = D, no zero block):
    #   acc_y = [Wr y | Wz y | Wg y] + fused bias       (tm, 3*Dp)
    #   acc_x = [Ur x | Uz x]                           (tm, 2*Dp)
    acc_y = jnp.dot(y_ref[...], wy_ref[...],
                    preferred_element_type=jnp.float32) + b_ref[...]
    acc_x = jnp.dot(x_bf, wx_ref[...], preferred_element_type=jnp.float32)

    r = jax.nn.sigmoid(acc_y[:, 0:D] + acc_x[:, 0:D])
    z = jax.nn.sigmoid(acc_y[:, Dp:Dp + D] + acc_x[:, Dp:Dp + D])  # -bg folded

    rx = (r * x).astype(jnp.bfloat16)
    h = jnp.tanh(acc_y[:, 2 * Dp:3 * Dp] +
                 jnp.dot(rx, ug_ref[...], preferred_element_type=jnp.float32))

    o_ref[...] = ((1.0 - z) * x + z * h[:, 0:D]).astype(o_ref.dtype)


def prepare_gating_params(params, bg=0.1):
    """Build the fused / padded / bf16 weights ONCE (hot-path free).

    params: six (D, D) weights in (in, out) layout (transpose of torch's
    (out, in)) plus six (D,) biases."""
    D = params["Wr"].shape[0]
    Dp = _round_up(D, 128)
    f32, bf16 = jnp.float32, jnp.bfloat16

    def npad(w):  # pad only the output (N) dim: (D, D) -> (D, Dp)
        return jnp.pad(w.astype(f32), ((0, 0), (0, Dp - D)))

    w_y = jnp.concatenate(
        [npad(params["Wr"]), npad(params["Wz"]), npad(params["Wg"])],
        axis=1).astype(bf16)                                   # (D, 3*Dp)
    w_x = jnp.concatenate(
        [npad(params["Ur"]), npad(params["Uz"])], axis=1).astype(bf16)  # (D, 2*Dp)
    ug = npad(params["Ug"]).astype(bf16)                       # (D, Dp)

    def bpad(b):
        return jnp.pad(b.astype(f32), (0, Dp - D))

    b_big = jnp.concatenate([
        bpad(params["br"] + params["cr"]),
        bpad(params["bz"] + params["cz"] - bg),                # fold -bg here
        bpad(params["bgw"] + params["cg"]),
    ]).reshape(1, 3 * Dp)                                      # (1, 3*Dp) f32

    return {"w_y": w_y, "w_x": w_x, "ug": ug, "b_big": b_big, "D": D, "Dp": Dp}


def gating_forward(x, y, fused, tile_m=512, out_dtype=jnp.float32):
    """x, y: (M, D) f32.  fused: output of prepare_gating_params()."""
    M, D = x.shape
    assert y.shape == (M, D) and D == fused["D"]
    Dp = fused["Dp"]

    tm, Mp = _choose_tile_m(M, tile_m)

    x_p = x.astype(jnp.float32)
    y_p = y.astype(jnp.bfloat16)
    if Mp != M:
        x_p = jnp.pad(x_p, ((0, Mp - M), (0, 0)))
        y_p = jnp.pad(y_p, ((0, Mp - M), (0, 0)))

    row_spec = pl.BlockSpec((tm, D), lambda i: (i, 0))
    wy_spec = pl.BlockSpec((D, 3 * Dp), lambda i: (0, 0))
    wx_spec = pl.BlockSpec((D, 2 * Dp), lambda i: (0, 0))
    ug_spec = pl.BlockSpec((D, Dp), lambda i: (0, 0))
    b_spec = pl.BlockSpec((1, 3 * Dp), lambda i: (0, 0))
    # NOTE: weight/bias specs have constant index maps -> fetched once and
    # VMEM-resident; single-buffering them (pipeline_mode) would only save
    # ~0.5 MB, so it is skipped for simplicity.

    out_bytes = jnp.dtype(out_dtype).itemsize
    cost = pl.CostEstimate(
        flops=2 * Mp * D * (3 * Dp + 2 * Dp + Dp),
        transcendentals=3 * Mp * D,
        bytes_accessed=(Mp * D * (2 + 4 + out_bytes)          # y bf16, x f32, out
                        + (3 * Dp + 2 * Dp + Dp) * D * 2      # bf16 weights
                        + 3 * Dp * 4),                        # f32 bias
    )

    out = pl.pallas_call(
        _gating_kernel,
        out_shape=jax.ShapeDtypeStruct((Mp, D), out_dtype),
        grid_spec=pltpu.PrefetchScalarGridSpec(
            num_scalar_prefetch=0,
            grid=(Mp // tm,),
            in_specs=[row_spec, row_spec, wy_spec, wx_spec, ug_spec, b_spec],
            out_specs=row_spec,
        ),
        compiler_params=pltpu.CompilerParams(
            dimension_semantics=("parallel",)),
        cost_estimate=cost,
    )(y_p, x_p, fused["w_y"], fused["w_x"], fused["ug"], fused["b_big"])

    return out if Mp == M else out[:M]


def gating_reference(x, y, params, bg=0.1):
    """Pure-JAX f32 reference matching the PyTorch forward."""
    def lin(a, w, b):
        return a @ w + b
    r = jax.nn.sigmoid(lin(y, params["Wr"], params["br"]) +
                       lin(x, params["Ur"], params["cr"]))
    z = jax.nn.sigmoid(lin(y, params["Wz"], params["bz"]) +
                       lin(x, params["Uz"], params["cz"]) - bg)
    h = jnp.tanh(lin(y, params["Wg"], params["bgw"]) +
                 lin(r * x, params["Ug"], params["cg"]))
    return (1.0 - z) * x + z * h


def init_params(key, d_input):
    """PyTorch-Linear-like init (uniform +/- 1/sqrt(fan_in)); weights stored
    as (in, out) = transpose of torch's (out, in)."""
    bound = 1.0 / jnp.sqrt(d_input)
    names_w = ["Wr", "Ur", "Wz", "Uz", "Wg", "Ug"]
    names_b = ["br", "cr", "bz", "cz", "bgw", "cg"]
    params = {}
    keys = jax.random.split(key, 12)
    for i, (nw, nb) in enumerate(zip(names_w, names_b)):
        params[nw] = jax.random.uniform(
            keys[2 * i], (d_input, d_input), jnp.float32, -bound, bound)
        params[nb] = jax.random.uniform(
            keys[2 * i + 1], (d_input,), jnp.float32, -bound, bound)
    return params


if __name__ == "__main__":
    d_input = 192          # module default
    batch, seq = 2, 8
    bg = 0.1

    key = jax.random.PRNGKey(0)
    kx, ky, kp = jax.random.split(key, 3)

    x = jax.random.normal(kx, (batch, seq, d_input), jnp.float32)
    y = jax.random.normal(ky, (batch, seq, d_input), jnp.float32)
    params = init_params(kp, d_input)

    # Fused weights are parameters: build once, reuse for every forward call.
    fused = prepare_gating_params(params, bg=bg)

    M = batch * seq
    x2 = x.reshape(M, d_input)
    y2 = y.reshape(M, d_input)

    out = jax.block_until_ready(gating_forward(x2, y2, fused))
    ref = gating_reference(x2, y2, params, bg=bg)
    assert out.shape == (M, d_input)
    # bf16 matmul operands + f32 accumulation vs pure-f32 reference.
    assert jnp.allclose(out, ref, atol=5e-2, rtol=5e-2), "mismatch vs reference"

    # Larger batch: exercises the multi-step row grid (grid=2 -> both v7x TCs)
    # and the optional bf16-output writeback path.
    kx2, ky2 = jax.random.split(jax.random.PRNGKey(1), 2)
    xb = jax.random.normal(kx2, (512, d_input), jnp.float32)
    yb = jax.random.normal(ky2, (512, d_input), jnp.float32)
    outb = jax.block_until_ready(
        gating_forward(xb, yb, fused, out_dtype=jnp.bfloat16))
    refb = gating_reference(xb, yb, params, bg=bg)
    assert jnp.allclose(outb.astype(jnp.float32), refb,
                        atol=5e-2, rtol=5e-2), "mismatch (tiled) vs reference"

    print("KERNEL_OK")
</pallas_src>

<mosaic_0001>
module attributes {stable_mosaic.version = 11 : i64} {
  func.func @_gating_kernel(%arg0: i32, %arg1: memref<16x192xbf16, #tpu.memory_space<vmem>>, %arg2: memref<16x192xf32, #tpu.memory_space<vmem>>, %arg3: memref<192x768xbf16, #tpu.memory_space<vmem>>, %arg4: memref<192x512xbf16, #tpu.memory_space<vmem>>, %arg5: memref<192x256xbf16, #tpu.memory_space<vmem>>, %arg6: memref<1x768xf32, #tpu.memory_space<vmem>>, %arg7: memref<16x192xf32, #tpu.memory_space<vmem>>) attributes {dimension_semantics = [#tpu.dimension_semantics<parallel>], iteration_bounds = array<i64: 1>, scalar_prefetch = 0 : i64, scratch_operands = 0 : i64, tpu.core_type = #tpu.core_type<tc>, window_params = [{transform_indices = @transform_0, window_bounds = array<i64: 16, 192>}, {transform_indices = @transform_1, window_bounds = array<i64: 16, 192>}, {pipeline_mode = #tpu.pipeline_mode<synchronous>, transform_indices = @transform_2, window_bounds = array<i64: 192, 768>}, {pipeline_mode = #tpu.pipeline_mode<synchronous>, transform_indices = @transform_3, window_bounds = array<i64: 192, 512>}, {pipeline_mode = #tpu.pipeline_mode<synchronous>, transform_indices = @transform_4, window_bounds = array<i64: 192, 256>}, {pipeline_mode = #tpu.pipeline_mode<synchronous>, transform_indices = @transform_5, window_bounds = array<i64: 1, 768>}, {transform_indices = @transform_6, window_bounds = array<i64: 16, 192>}]} {
    %c0 = arith.constant 0 : index
    %c0_0 = arith.constant 0 : index
    %0 = vector.load %arg2[%c0, %c0_0] : memref<16x192xf32, #tpu.memory_space<vmem>>, vector<16x192xf32>
    %1 = arith.truncf %0 : vector<16x192xf32> to vector<16x192xbf16>
    %c0_1 = arith.constant 0 : index
    %c0_2 = arith.constant 0 : index
    %2 = vector.load %arg1[%c0_1, %c0_2] : memref<16x192xbf16, #tpu.memory_space<vmem>>, vector<16x192xbf16>
    %c0_3 = arith.constant 0 : index
    %c0_4 = arith.constant 0 : index
    %3 = vector.load %arg3[%c0_3, %c0_4] : memref<192x768xbf16, #tpu.memory_space<vmem>>, vector<192x768xbf16>
    %cst = arith.constant dense<0.000000e+00> : vector<16x768xf32>
    %4 = tpu.matmul %2, %3, %cst {dimension_numbers = #tpu.dot_dimension_numbers<[1], [0], [0], [1], [0, 0, 1, 1], [], []>} : vector<16x192xbf16>, vector<192x768xbf16>, vector<16x768xf32> -> vector<16x768xf32>
    %c0_5 = arith.constant 0 : index
    %c0_6 = arith.constant 0 : index
    %5 = vector.load %arg6[%c0_5, %c0_6] : memref<1x768xf32, #tpu.memory_space<vmem>>, vector<1x768xf32>
    %6 = vector.broadcast %5 : vector<1x768xf32> to vector<16x768xf32>
    %7 = arith.addf %4, %6 : vector<16x768xf32>
    %c0_7 = arith.constant 0 : index
    %c0_8 = arith.constant 0 : index
    %8 = vector.load %arg4[%c0_7, %c0_8] : memref<192x512xbf16, #tpu.memory_space<vmem>>, vector<192x512xbf16>
    %cst_9 = arith.constant dense<0.000000e+00> : vector<16x512xf32>
    %9 = tpu.matmul %1, %8, %cst_9 {dimension_numbers = #tpu.dot_dimension_numbers<[1], [0], [0], [1], [0, 0, 1, 1], [], []>} : vector<16x192xbf16>, vector<192x512xbf16>, vector<16x512xf32> -> vector<16x512xf32>
    %10 = vector.extract_strided_slice %7 {offsets = [0, 0], sizes = [16, 192], strides = [1, 1]} : vector<16x768xf32> to vector<16x192xf32>
    %11 = vector.extract_strided_slice %9 {offsets = [0, 0], sizes = [16, 192], strides = [1, 1]} : vector<16x512xf32> to vector<16x192xf32>
    %12 = arith.addf %10, %11 : vector<16x192xf32>
    %13 = arith.negf %12 : vector<16x192xf32>
    %14 = math.exp %13 : vector<16x192xf32>
    %cst_10 = arith.constant 1.000000e+00 : f32
    %15 = vector.broadcast %cst_10 : f32 to vector<16x192xf32>
    %16 = arith.addf %15, %14 : vector<16x192xf32>
    %17 = arith.divf %15, %16 : vector<16x192xf32>
    %18 = vector.extract_strided_slice %7 {offsets = [0, 256], sizes = [16, 192], strides = [1, 1]} : vector<16x768xf32> to vector<16x192xf32>
    %19 = vector.extract_strided_slice %9 {offsets = [0, 256], sizes = [16, 192], strides = [1, 1]} : vector<16x512xf32> to vector<16x192xf32>
    %20 = arith.addf %18, %19 : vector<16x192xf32>
    %21 = arith.negf %20 : vector<16x192xf32>
    %22 = math.exp %21 : vector<16x192xf32>
    %cst_11 = arith.constant 1.000000e+00 : f32
    %23 = vector.broadcast %cst_11 : f32 to vector<16x192xf32>
    %24 = arith.addf %23, %22 : vector<16x192xf32>
    %25 = arith.divf %23, %24 : vector<16x192xf32>
    %26 = arith.mulf %17, %0 : vector<16x192xf32>
    %27 = arith.truncf %26 : vector<16x192xf32> to vector<16x192xbf16>
    %28 = vector.extract_strided_slice %7 {offsets = [0, 512], sizes = [16, 256], strides = [1, 1]} : vector<16x768xf32> to vector<16x256xf32>
    %c0_12 = arith.constant 0 : index
    %c0_13 = arith.constant 0 : index
    %29 = vector.load %arg5[%c0_12, %c0_13] : memref<192x256xbf16, #tpu.memory_space<vmem>>, vector<192x256xbf16>
    %cst_14 = arith.constant dense<0.000000e+00> : vector<16x256xf32>
    %30 = tpu.matmul %27, %29, %cst_14 {dimension_numbers = #tpu.dot_dimension_numbers<[1], [0], [0], [1], [0, 0, 1, 1], [], []>} : vector<16x192xbf16>, vector<192x256xbf16>, vector<16x256xf32> -> vector<16x256xf32>
    %31 = arith.addf %28, %30 : vector<16x256xf32>
    %32 = math.tanh %31 : vector<16x256xf32>
    %cst_15 = arith.constant 1.000000e+00 : f32
    %33 = vector.broadcast %cst_15 : f32 to vector<16x192xf32>
    %34 = arith.subf %33, %25 : vector<16x192xf32>
    %35 = arith.mulf %34, %0 : vector<16x192xf32>
    %36 = vector.extract_strided_slice %32 {offsets = [0, 0], sizes = [16, 192], strides = [1, 1]} : vector<16x256xf32> to vector<16x192xf32>
    %37 = arith.mulf %25, %36 : vector<16x192xf32>
    %38 = arith.addf %35, %37 : vector<16x192xf32>
    %c0_16 = arith.constant 0 : index
    %c0_17 = arith.constant 0 : index
    %39 = vector.load %arg7[%c0_16, %c0_17] : memref<16x192xf32, #tpu.memory_space<vmem>>, vector<16x192xf32>
    tpu.vector_store %arg7[%c0_16, %c0_17], %38 {strides = array<i32>} : memref<16x192xf32, #tpu.memory_space<vmem>>, vector<16x192xf32>,
    return
  }
  func.func @transform_0(%arg0: i32) -> (i32, i32) {
    %c0_i32 = arith.constant 0 : i32
    %c0_i32_0 = arith.constant 0 : i32
    return %arg0, %c0_i32 : i32, i32
  }
  func.func @transform_1(%arg0: i32) -> (i32, i32) {
    %c0_i32 = arith.constant 0 : i32
    %c0_i32_0 = arith.constant 0 : i32
    return %arg0, %c0_i32 : i32, i32
  }
  func.func @transform_2(%arg0: i32) -> (i32, i32) {
    %c0_i32 = arith.constant 0 : i32
    %c0_i32_0 = arith.constant 0 : i32
    %c0_i32_1 = arith.constant 0 : i32
    return %c0_i32, %c0_i32_0 : i32, i32
  }
  func.func @transform_3(%arg0: i32) -> (i32, i32) {
    %c0_i32 = arith.constant 0 : i32
    %c0_i32_0 = arith.constant 0 : i32
    %c0_i32_1 = arith.constant 0 : i32
    return %c0_i32, %c0_i32_0 : i32, i32
  }
  func.func @transform_4(%arg0: i32) -> (i32, i32) {
    %c0_i32 = arith.constant 0 : i32
    %c0_i32_0 = arith.constant 0 : i32
    %c0_i32_1 = arith.constant 0 : i32
    return %c0_i32, %c0_i32_0 : i32, i32
  }
  func.func @transform_5(%arg0: i32) -> (i32, i32) {
    %c0_i32 = arith.constant 0 : i32
    %c0_i32_0 = arith.constant 0 : i32
    %c0_i32_1 = arith.constant 0 : i32
    return %c0_i32, %c0_i32_0 : i32, i32
  }
  func.func @transform_6(%arg0: i32) -> (i32, i32) {
    %c0_i32 = arith.constant 0 : i32
    %c0_i32_0 = arith.constant 0 : i32
    return %arg0, %c0_i32 : i32, i32
  }
}

</mosaic_0001>

<llo_original>
// kernel: tpu_custom_call.1
$region0: #{tpu_custom_call.1}
  #allocation0 [shape = 'u32[]', space=smem, size = 0x4, offset = 0x4, fixed_abs, tag = 'smem constant byte address 0x4 - core index']
  #allocation1 [shape = 'u32[144,128]{1,0:T(1,128)}', space=vmem, size = 0x12000, scoped, tag = 'internal scratch']
  %s0 = inlined_call_operand.hbm [shape: bf16[16,192], index: 0, kind: input, shape index: {}]
  %s1 = inlined_call_operand.hbm [shape: f32[16,192], index: 1, kind: input, shape index: {}]
  %s2 = inlined_call_operand.hbm [shape: bf16[192,768], index: 2, kind: input, shape index: {}]
  %s3 = inlined_call_operand.hbm [shape: bf16[192,512], index: 3, kind: input, shape index: {}]
  %s4 = inlined_call_operand.hbm [shape: bf16[192,256], index: 4, kind: input, shape index: {}]
  %s5 = inlined_call_operand.vmem [shape: f32[1,768], index: 5, kind: input, shape index: {}]
  %s6 = inlined_call_operand.hbm [shape: f32[16,192], index: 6, kind: output, shape index: {}]
  %s7 = sld [smem:[#allocation0]]
  $region54: #{tpu_custom_call.1} parent=0
    _
  %s9 = ssub.s32 1, %s7
  %s10 = scalar_select 0, %s9, %s7
  $region1: #{tpu_custom_call.1} parent=0
    #allocation2 [shape = 'u8[8192]{0}', space=vmem, size = 0x2000, scoped, tag = 'input window, operand 0, single buffered']
    #allocation3 [shape = 's32[1]{0}', space=sflag, size = 0x4, scoped, tag = 'scoped memory for tpu_custom_call.1']
    #allocation4 [shape = 's32[1]{0}', space=sflag, size = 0x4, scoped, tag = 'scoped memory for tpu_custom_call.1']
    #allocation5 [shape = 'u8[16384]{0}', space=vmem, size = 0x4000, scoped, tag = 'input window, operand 1, single buffered']
    #allocation6 [shape = 's32[1]{0}', space=sflag, size = 0x4, scoped, tag = 'scoped memory for tpu_custom_call.1']
    #allocation7 [shape = 'u8[294912]{0}', space=vmem, size = 0x48000, scoped, tag = 'input window, operand 2, single buffered']
    #allocation8 [shape = 'u8[196608]{0}', space=vmem, size = 0x30000, scoped, tag = 'input window, operand 3, single buffered']
    #allocation9 [shape = 's32[1]{0}', space=sflag, size = 0x4, scoped, tag = 'scoped memory for tpu_custom_call.1']
    #allocation10 [shape = 'u8[98304]{0}', space=vmem, size = 0x18000, scoped, tag = 'input window, operand 4, single buffered']
    #allocation11 [shape = 'u8[16384]{0}', space=vmem, size = 0x4000, scoped, tag = 'output window, operand 0, single buffered']
    %11 = vsyncpa [#allocation3], 0
    %12 = vsyncpa [#allocation6], 0
    %13 = vsyncpa [#allocation9], 0
    %14 = vsyncpa [#allocation4], 0
    // Predicated region
    $region2: #{tpu_custom_call.1} parent=1 // pred_check
      _
    $region3: #{tpu_custom_call.1} parent=1 // pred_check_branch
      %16 = sbr.rel (0) target = $region5
    $region4: #{tpu_custom_call.1} parent=1 // pred_region
      %s18 = ssub.s32 256, 256
      %19 = vsyncadd [#allocation3], %s18
      %s20 = sshll.u32 [#allocation2], 4
      %s21 = int_to_ptr.vmem [resolvable:$true] %s20
      %26 = dma.hbm_to_vmem [thread:$0]  %s0, 256, %s21, [#allocation3], 128, 128, 8
    $region5: #{tpu_custom_call.1} parent=1 // pred_fallthru
      _
    // Predicated region
    $region6: #{tpu_custom_call.1} parent=1 // pred_check
      _
    $region7: #{tpu_custom_call.1} parent=1 // pred_check_branch
      %28 = sbr.rel (0) target = $region9
    $region8: #{tpu_custom_call.1} parent=1 // pred_region
      %s30 = ssub.s32 512, 512
      %31 = vsyncadd [#allocation6], %s30
      %s32 = sshll.u32 [#allocation5], 4
      %s33 = int_to_ptr.vmem [resolvable:$true] %s32
      %38 = dma.hbm_to_vmem [thread:$0]  %s1, 512, %s33, [#allocation6], 256, 256, 16
    $region9: #{tpu_custom_call.1} parent=1 // pred_fallthru
      _
    // Predicated region
    $region10: #{tpu_custom_call.1} parent=1 // pred_check
      _
    $region11: #{tpu_custom_call.1} parent=1 // pred_check_branch
      %40 = sbr.rel (0) target = $region13
    $region12: #{tpu_custom_call.1} parent=1 // pred_region
      %s42 = ssub.s32 9216, 9216
      %43 = vsyncadd [#allocation6], %s42
      %s44 = sshll.u32 [#allocation7], 4
      %s45 = int_to_ptr.vmem [resolvable:$true] %s44
      %50 = dma.hbm_to_vmem [thread:$0]  %s2, 9216, %s45, [#allocation6], 384, 384, 24
    $region13: #{tpu_custom_call.1} parent=1 // pred_fallthru
      _
    // Predicated region
    $region14: #{tpu_custom_call.1} parent=1 // pred_check
      _
    $region15: #{tpu_custom_call.1} parent=1 // pred_check_branch
      %52 = sbr.rel (0) target = $region17
    $region16: #{tpu_custom_call.1} parent=1 // pred_region
      %s54 = ssub.s32 6144, 6144
      %55 = vsyncadd [#allocation9], %s54
      %s56 = sshll.u32 [#allocation8], 4
      %s57 = int_to_ptr.vmem [resolvable:$true] %s56
      %62 = dma.hbm_to_vmem [thread:$0]  %s3, 6144, %s57, [#allocation9], 256, 256, 16
    $region17: #{tpu_custom_call.1} parent=1 // pred_fallthru
      _
    // Predicated region
    $region18: #{tpu_custom_call.1} parent=1 // pred_check
      _
    $region19: #{tpu_custom_call.1} parent=1 // pred_check_branch
      %64 = sbr.rel (0) target = $region21
    $region20: #{tpu_custom_call.1} parent=1 // pred_region
      %s66 = ssub.s32 3072, 3072
      %67 = vsyncadd [#allocation9], %s66
      %s68 = sshll.u32 [#allocation10], 4
      %s69 = int_to_ptr.vmem [resolvable:$true] %s68
      %74 = dma.hbm_to_vmem [thread:$0]  %s4, 3072, %s69, [#allocation9], 128, 128, 8
    $region21: #{tpu_custom_call.1} parent=1 // pred_fallthru
      _
    // Predicated region
    $region22: #{tpu_custom_call.1} parent=1 // pred_check
      _
    $region23: #{tpu_custom_call.1} parent=1 // pred_check_branch
      %76 = sbr.rel (0) target = $region25
    $region24: #{tpu_custom_call.1} parent=1 // pred_region
      _
    $region25: #{tpu_custom_call.1} parent=1 // pred_fallthru
      _
    // Predicated region
    $region26: #{tpu_custom_call.1} parent=1 // pred_check
      _
    $region27: #{tpu_custom_call.1} parent=1 // pred_check_branch
      %78 = sbr.rel (0) target = $region29
    $region28: #{tpu_custom_call.1} parent=1 // pred_region
      %79 = dma.done [#allocation3], 256
    $region29: #{tpu_custom_call.1} parent=1 // pred_fallthru
      _
    // Predicated region
    $region30: #{tpu_custom_call.1} parent=1 // pred_check
      _
    $region31: #{tpu_custom_call.1} parent=1 // pred_check_branch
      %81 = sbr.rel (0) target = $region33
    $region32: #{tpu_custom_call.1} parent=1 // pred_region
      %82 = dma.done [#allocation6], 512
    $region33: #{tpu_custom_call.1} parent=1 // pred_fallthru
      _
    // Predicated region
    $region34: #{tpu_custom_call.1} parent=1 // pred_check
      _
    $region35: #{tpu_custom_call.1} parent=1 // pred_check_branch
      %84 = sbr.rel (0) target = $region37
    $region36: #{tpu_custom_call.1} parent=1 // pred_region
      %85 = dma.done [#allocation6], 9216
    $region37: #{tpu_custom_call.1} parent=1 // pred_fallthru
      _
    // Predicated region
    $region38: #{tpu_custom_call.1} parent=1 // pred_check
      _
    $region39: #{tpu_custom_call.1} parent=1 // pred_check_branch
      %87 = sbr.rel (0) target = $region41
    $region40: #{tpu_custom_call.1} parent=1 // pred_region
      %88 = dma.done [#allocation9], 6144
    $region41: #{tpu_custom_call.1} parent=1 // pred_fallthru
      _
    // Predicated region
    $region42: #{tpu_custom_call.1} parent=1 // pred_check
      _
    $region43: #{tpu_custom_call.1} parent=1 // pred_check_branch
      %90 = sbr.rel (0) target = $region45
    $region44: #{tpu_custom_call.1} parent=1 // pred_region
      %91 = dma.done [#allocation9], 3072
    $region45: #{tpu_custom_call.1} parent=1 // pred_fallthru
      _
    %v93 = vld [vmem:[#allocation5] sm:$0xff]
    %v94 = vld [vmem:[#allocation5 + $0x8] sm:$0xff]
    %v95 = vld [vmem:[#allocation5 + $0x10] sm:$0xff]
    %v96 = vld [vmem:[#allocation5 + $0x18] sm:$0xff]
    %v97 = vpack.c.bf16 %v95, %v93
    %v98 = vpack.c.bf16 %v96, %v94
    %v99 = vld [vmem:[#allocation2] sm:$0xff]
    %v100 = vld [vmem:[#allocation2 + $0x8] sm:$0xff]
    %v101 = vld [vmem:[#allocation7] sm:$0xff]
    %v102 = vld [vmem:[#allocation7 + $0x8] sm:$0xff]
    %v103 = vld [vmem:[#allocation7 + $0x10] sm:$0xff]
    %v104 = vld [vmem:[#allocation7 + $0x18] sm:$0xff]
    %v105 = vld [vmem:[#allocation7 + $0x20] sm:$0xff]
    %v106 = vld [vmem:[#allocation7 + $0x28] sm:$0xff]
    %v107 = vld [vmem:[#allocation7 + $0x30] sm:$0xff]
    %v108 = vld [vmem:[#allocation7 + $0x38] sm:$0xff]
    %v109 = vld [vmem:[#allocation7 + $0x40] sm:$0xff]
    %v110 = vld [vmem:[#allocation7 + $0x48] sm:$0xff]
    %v111 = vld [vmem:[#allocation7 + $0x50] sm:$0xff]
    %v112 = vld [vmem:[#allocation7 + $0x58] sm:$0xff]
    %v113 = vld [vmem:[#allocation7 + $0x60] sm:$0xff]
    %v114 = vld [vmem:[#allocation7 + $0x68] sm:$0xff]
    %v115 = vld [vmem:[#allocation7 + $0x70] sm:$0xff]
    %v116 = vld [vmem:[#allocation7 + $0x78] sm:$0xff]
    %v117 = vld [vmem:[#allocation7 + $0x80] sm:$0xff]
    %v118 = vld [vmem:[#allocation7 + $0x88] sm:$0xff]
    %v119 = vld [vmem:[#allocation7 + $0x90] sm:$0xff]
    %v120 = vld [vmem:[#allocation7 + $0x98] sm:$0xff]
    %v121 = vld [vmem:[#allocation7 + $0xa0] sm:$0xff]
    %v122 = vld [vmem:[#allocation7 + $0xa8] sm:$0xff]
    %v123 = vld [vmem:[#allocation7 + $0xb0] sm:$0xff]
    %v124 = vld [vmem:[#allocation7 + $0xb8] sm:$0xff]
    %v125 = vld [vmem:[#allocation7 + $0xc0] sm:$0xff]
    %v126 = vld [vmem:[#allocation7 + $0xc8] sm:$0xff]
    %v127 = vld [vmem:[#allocation7 + $0xd0] sm:$0xff]
    %v128 = vld [vmem:[#allocation7 + $0xd8] sm:$0xff]
    %v129 = vld [vmem:[#allocation7 + $0xe0] sm:$0xff]
    %v130 = vld [vmem:[#allocation7 + $0xe8] sm:$0xff]
    %v131 = vld [vmem:[#allocation7 + $0xf0] sm:$0xff]
    %v132 = vld [vmem:[#allocation7 + $0xf8] sm:$0xff]
    %v133 = vld [vmem:[#allocation7 + $0x100] sm:$0xff]
    %v134 = vld [vmem:[#allocation7 + $0x108] sm:$0xff]
    %v135 = vld [vmem:[#allocation7 + $0x110] sm:$0xff]
    %v136 = vld [vmem:[#allocation7 + $0x118] sm:$0xff]
    %v137 = vld [vmem:[#allocation7 + $0x120] sm:$0xff]
    %v138 = vld [vmem:[#allocation7 + $0x128] sm:$0xff]
    %v139 = vld [vmem:[#allocation7 + $0x130] sm:$0xff]
    %v140 = vld [vmem:[#allocation7 + $0x138] sm:$0xff]
    %v141 = vld [vmem:[#allocation7 + $0x140] sm:$0xff]
    %v142 = vld [vmem:[#allocation7 + $0x148] sm:$0xff]
    %v143 = vld [vmem:[#allocation7 + $0x150] sm:$0xff]
    %v144 = vld [vmem:[#allocation7 + $0x158] sm:$0xff]
    %v145 = vld [vmem:[#allocation7 + $0x160] sm:$0xff]
    %v146 = vld [vmem:[#allocation7 + $0x168] sm:$0xff]
    %v147 = vld [vmem:[#allocation7 + $0x170] sm:$0xff]
    %v148 = vld [vmem:[#allocation7 + $0x178] sm:$0xff]
    %v149 = vld [vmem:[#allocation7 + $0x180] sm:$0xff]
    %v150 = vld [vmem:[#allocation7 + $0x188] sm:$0xff]
    %v151 = vld [vmem:[#allocation7 + $0x190] sm:$0xff]
    %v152 = vld [vmem:[#allocation7 + $0x198] sm:$0xff]
    %v153 = vld [vmem:[#allocation7 + $0x1a0] sm:$0xff]
    %v154 = vld [vmem:[#allocation7 + $0x1a8] sm:$0xff]
    %v155 = vld [vmem:[#allocation7 + $0x1b0] sm:$0xff]
    %v156 = vld [vmem:[#allocation7 + $0x1b8] sm:$0xff]
    %v157 = vld [vmem:[#allocation7 + $0x1c0] sm:$0xff]
    %v158 = vld [vmem:[#allocation7 + $0x1c8] sm:$0xff]
    %v159 = vld [vmem:[#allocation7 + $0x1d0] sm:$0xff]
    %v160 = vld [vmem:[#allocation7 + $0x1d8] sm:$0xff]
    %v161 = vld [vmem:[#allocation7 + $0x1e0] sm:$0xff]
    %v162 = vld [vmem:[#allocation7 + $0x1e8] sm:$0xff]
    %v163 = vld [vmem:[#allocation7 + $0x1f0] sm:$0xff]
    %v164 = vld [vmem:[#allocation7 + $0x1f8] sm:$0xff]
    %v165 = vld [vmem:[#allocation7 + $0x200] sm:$0xff]
    %v166 = vld [vmem:[#allocation7 + $0x208] sm:$0xff]
    %v167 = vld [vmem:[#allocation7 + $0x210] sm:$0xff]
    %v168 = vld [vmem:[#allocation7 + $0x218] sm:$0xff]
    %v169 = vld [vmem:[#allocation7 + $0x220] sm:$0xff]
    %v170 = vld [vmem:[#allocation7 + $0x228] sm:$0xff]
    %v171 = vld [vmem:[#allocation7 + $0x230] sm:$0xff]
    %v172 = vld [vmem:[#allocation7 + $0x238] sm:$0xff]
    %v173 = vld [vmem:[%s5] sm:$0x3f]
    %v175 = vlaneseq
    %v176 = vshrl.u32 %v175, 7
    %v177 = vsub.s32 0, %v176
    %v178 = vrot.slane %v173, %v177
    %v179 = vlaneseq
    %v180 = vshrl.u32 %v179, 7
    %v181 = vsub.s32 1, %v180
    %v182 = vrot.slane %v173, %v181
    %v183 = vlaneseq
    %v184 = vshrl.u32 %v183, 7
    %v185 = vsub.s32 2, %v184
    %v186 = vrot.slane %v173, %v185
    %v187 = vlaneseq
    %v188 = vshrl.u32 %v187, 7
    %v189 = vsub.s32 3, %v188
    %v190 = vrot.slane %v173, %v189
    %v191 = vlaneseq
    %v192 = vshrl.u32 %v191, 7
    %v193 = vsub.s32 4, %v192
    %v194 = vrot.slane %v173, %v193
    %v195 = vlaneseq
    %v196 = vshrl.u32 %v195, 7
    %v197 = vsub.s32 5, %v196
    %v198 = vrot.slane %v173, %v197
    %v207 = vunpack.c.l.b16 %v99
    %v208 = vunpack.c.h.b16 %v99
    %v209 = vunpack.c.l.b16 %v100
    %v210 = vunpack.c.h.b16 %v100
    %v211 = vpack.c.b16 %v209, %v207
    %v212 = vpack.c.b16 %v210, %v208
    %v286 = vunpack.c.l.b16 %v101
    %v287 = vunpack.c.h.b16 %v101
    %v288 = vunpack.c.l.b16 %v102
    %v289 = vunpack.c.h.b16 %v102
    %v290 = vunpack.c.l.b16 %v103
    %v291 = vunpack.c.h.b16 %v103
    %v292 = vunpack.c.l.b16 %v104
    %v293 = vunpack.c.h.b16 %v104
    %v294 = vunpack.c.l.b16 %v105
    %v295 = vunpack.c.h.b16 %v105
    %v296 = vunpack.c.l.b16 %v106
    %v297 = vunpack.c.h.b16 %v106
    %v298 = vunpack.c.l.b16 %v107
    %v299 = vunpack.c.h.b16 %v107
    %v300 = vunpack.c.l.b16 %v108
    %v301 = vunpack.c.h.b16 %v108
    %v302 = vunpack.c.l.b16 %v109
    %v303 = vunpack.c.h.b16 %v109
    %v304 = vunpack.c.l.b16 %v110
    %v305 = vunpack.c.h.b16 %v110
    %v306 = vunpack.c.l.b16 %v111
    %v307 = vunpack.c.h.b16 %v111
    %v308 = vunpack.c.l.b16 %v112
    %v309 = vunpack.c.h.b16 %v112
    %v310 = vunpack.c.l.b16 %v113
    %v311 = vunpack.c.h.b16 %v113
    %v312 = vunpack.c.l.b16 %v114
    %v313 = vunpack.c.h.b16 %v114
    %v314 = vunpack.c.l.b16 %v115
    %v315 = vunpack.c.h.b16 %v115
    %v316 = vunpack.c.l.b16 %v116
    %v317 = vunpack.c.h.b16 %v116
    %v318 = vunpack.c.l.b16 %v117
    %v319 = vunpack.c.h.b16 %v117
    %v320 = vunpack.c.l.b16 %v118
    %v321 = vunpack.c.h.b16 %v118
    %v322 = vunpack.c.l.b16 %v119
    %v323 = vunpack.c.h.b16 %v119
    %v324 = vunpack.c.l.b16 %v120
    %v325 = vunpack.c.h.b16 %v120
    %v326 = vunpack.c.l.b16 %v121
    %v327 = vunpack.c.h.b16 %v121
    %v328 = vunpack.c.l.b16 %v122
    %v329 = vunpack.c.h.b16 %v122
    %v330 = vunpack.c.l.b16 %v123
    %v331 = vunpack.c.h.b16 %v123
    %v332 = vunpack.c.l.b16 %v124
    %v333 = vunpack.c.h.b16 %v124
    %v334 = vunpack.c.l.b16 %v125
    %v335 = vunpack.c.h.b16 %v125
    %v336 = vunpack.c.l.b16 %v126
    %v337 = vunpack.c.h.b16 %v126
    %v338 = vunpack.c.l.b16 %v127
    %v339 = vunpack.c.h.b16 %v127
    %v340 = vunpack.c.l.b16 %v128
    %v341 = vunpack.c.h.b16 %v128
    %v342 = vunpack.c.l.b16 %v129
    %v343 = vunpack.c.h.b16 %v129
    %v344 = vunpack.c.l.b16 %v130
    %v345 = vunpack.c.h.b16 %v130
    %v346 = vunpack.c.l.b16 %v131
    %v347 = vunpack.c.h.b16 %v131
    %v348 = vunpack.c.l.b16 %v132
    %v349 = vunpack.c.h.b16 %v132
    %v350 = vunpack.c.l.b16 %v133
    %v351 = vunpack.c.h.b16 %v133
    %v352 = vunpack.c.l.b16 %v134
    %v353 = vunpack.c.h.b16 %v134
    %v354 = vunpack.c.l.b16 %v135
    %v355 = vunpack.c.h.b16 %v135
    %v356 = vunpack.c.l.b16 %v136
    %v357 = vunpack.c.h.b16 %v136
    %v358 = vunpack.c.l.b16 %v137
    %v359 = vunpack.c.h.b16 %v137
    %v360 = vunpack.c.l.b16 %v138
    %v361 = vunpack.c.h.b16 %v138
    %v362 = vunpack.c.l.b16 %v139
    %v363 = vunpack.c.h.b16 %v139
    %v364 = vunpack.c.l.b16 %v140
    %v365 = vunpack.c.h.b16 %v140
    %v366 = vunpack.c.l.b16 %v141
    %v367 = vunpack.c.h.b16 %v141
    %v368 = vunpack.c.l.b16 %v142
    %v369 = vunpack.c.h.b16 %v142
    %v370 = vunpack.c.l.b16 %v143
    %v371 = vunpack.c.h.b16 %v143
    %v372 = vunpack.c.l.b16 %v144
    %v373 = vunpack.c.h.b16 %v144
    %v374 = vunpack.c.l.b16 %v145
    %v375 = vunpack.c.h.b16 %v145
    %v376 = vunpack.c.l.b16 %v146
    %v377 = vunpack.c.h.b16 %v146
    %v378 = vunpack.c.l.b16 %v147
    %v379 = vunpack.c.h.b16 %v147
    %v380 = vunpack.c.l.b16 %v148
    %v381 = vunpack.c.h.b16 %v148
    %v382 = vunpack.c.l.b16 %v149
    %v383 = vunpack.c.h.b16 %v149
    %v384 = vunpack.c.l.b16 %v150
    %v385 = vunpack.c.h.b16 %v150
    %v386 = vunpack.c.l.b16 %v151
    %v387 = vunpack.c.h.b16 %v151
    %v388 = vunpack.c.l.b16 %v152
    %v389 = vunpack.c.h.b16 %v152
    %v390 = vunpack.c.l.b16 %v153
    %v391 = vunpack.c.h.b16 %v153
    %v392 = vunpack.c.l.b16 %v154
    %v393 = vunpack.c.h.b16 %v154
    %v394 = vunpack.c.l.b16 %v155
    %v395 = vunpack.c.h.b16 %v155
    %v396 = vunpack.c.l.b16 %v156
    %v397 = vunpack.c.h.b16 %v156
    %v398 = vunpack.c.l.b16 %v157
    %v399 = vunpack.c.h.b16 %v157
    %v400 = vunpack.c.l.b16 %v158
    %v401 = vunpack.c.h.b16 %v158
    %v402 = vunpack.c.l.b16 %v159
    %v403 = vunpack.c.h.b16 %v159
    %v404 = vunpack.c.l.b16 %v160
    %v405 = vunpack.c.h.b16 %v160
    %v406 = vunpack.c.l.b16 %v161
    %v407 = vunpack.c.h.b16 %v161
    %v408 = vunpack.c.l.b16 %v162
    %v409 = vunpack.c.h.b16 %v162
    %v410 = vunpack.c.l.b16 %v163
    %v411 = vunpack.c.h.b16 %v163
    %v412 = vunpack.c.l.b16 %v164
    %v413 = vunpack.c.h.b16 %v164
    %v414 = vunpack.c.l.b16 %v165
    %v415 = vunpack.c.h.b16 %v165
    %v416 = vunpack.c.l.b16 %v166
    %v417 = vunpack.c.h.b16 %v166
    %v418 = vunpack.c.l.b16 %v167
    %v419 = vunpack.c.h.b16 %v167
    %v420 = vunpack.c.l.b16 %v168
    %v421 = vunpack.c.h.b16 %v168
    %v422 = vunpack.c.l.b16 %v169
    %v423 = vunpack.c.h.b16 %v169
    %v424 = vunpack.c.l.b16 %v170
    %v425 = vunpack.c.h.b16 %v170
    %v426 = vunpack.c.l.b16 %v171
    %v427 = vunpack.c.h.b16 %v171
    %v428 = vunpack.c.l.b16 %v172
    %v429 = vunpack.c.h.b16 %v172
    %v430 = vpack.c.b16 %v292, %v286
    %v431 = vpack.c.b16 %v293, %v287
    %v432 = vpack.c.b16 %v294, %v288
    %v433 = vpack.c.b16 %v295, %v289
    %v434 = vpack.c.b16 %v296, %v290
    %v435 = vpack.c.b16 %v297, %v291
    %v436 = vpack.c.b16 %v304, %v298
    %v437 = vpack.c.b16 %v305, %v299
    %v438 = vpack.c.b16 %v306, %v300
    %v439 = vpack.c.b16 %v307, %v301
    %v440 = vpack.c.b16 %v308, %v302
    %v441 = vpack.c.b16 %v309, %v303
    %v442 = vpack.c.b16 %v316, %v310
    %v443 = vpack.c.b16 %v317, %v311
    %v444 = vpack.c.b16 %v318, %v312
    %v445 = vpack.c.b16 %v319, %v313
    %v446 = vpack.c.b16 %v320, %v314
    %v447 = vpack.c.b16 %v321, %v315
    %v448 = vpack.c.b16 %v328, %v322
    %v449 = vpack.c.b16 %v329, %v323
    %v450 = vpack.c.b16 %v330, %v324
    %v451 = vpack.c.b16 %v331, %v325
    %v452 = vpack.c.b16 %v332, %v326
    %v453 = vpack.c.b16 %v333, %v327
    %v454 = vpack.c.b16 %v340, %v334
    %v455 = vpack.c.b16 %v341, %v335
    %v456 = vpack.c.b16 %v342, %v336
    %v457 = vpack.c.b16 %v343, %v337
    %v458 = vpack.c.b16 %v344, %v338
    %v459 = vpack.c.b16 %v345, %v339
    %v460 = vpack.c.b16 %v352, %v346
    %v461 = vpack.c.b16 %v353, %v347
    %v462 = vpack.c.b16 %v354, %v348
    %v463 = vpack.c.b16 %v355, %v349
    %v464 = vpack.c.b16 %v356, %v350
    %v465 = vpack.c.b16 %v357, %v351
    %v466 = vpack.c.b16 %v364, %v358
    %v467 = vpack.c.b16 %v365, %v359
    %v468 = vpack.c.b16 %v366, %v360
    %v469 = vpack.c.b16 %v367, %v361
    %v470 = vpack.c.b16 %v368, %v362
    %v471 = vpack.c.b16 %v369, %v363
    %v472 = vpack.c.b16 %v376, %v370
    %v473 = vpack.c.b16 %v377, %v371
    %v474 = vpack.c.b16 %v378, %v372
    %v475 = vpack.c.b16 %v379, %v373
    %v476 = vpack.c.b16 %v380, %v374
    %v477 = vpack.c.b16 %v381, %v375
    %v478 = vpack.c.b16 %v388, %v382
    %v479 = vpack.c.b16 %v389, %v383
    %v480 = vpack.c.b16 %v390, %v384
    %v481 = vpack.c.b16 %v391, %v385
    %v482 = vpack.c.b16 %v392, %v386
    %v483 = vpack.c.b16 %v393, %v387
    %v484 = vpack.c.b16 %v400, %v394
    %v485 = vpack.c.b16 %v401, %v395
    %v486 = vpack.c.b16 %v402, %v396
    %v487 = vpack.c.b16 %v403, %v397
    %v488 = vpack.c.b16 %v404, %v398
    %v489 = vpack.c.b16 %v405, %v399
    %v490 = vpack.c.b16 %v412, %v406
    %v491 = vpack.c.b16 %v413, %v407
    %v492 = vpack.c.b16 %v414, %v408
    %v493 = vpack.c.b16 %v415, %v409
    %v494 = vpack.c.b16 %v416, %v410
    %v495 = vpack.c.b16 %v417, %v411
    %v496 = vpack.c.b16 %v424, %v418
    %v497 = vpack.c.b16 %v425, %v419
    %v498 = vpack.c.b16 %v426, %v420
    %v499 = vpack.c.b16 %v427, %v421
    %v500 = vpack.c.b16 %v428, %v422
    %v501 = vpack.c.b16 %v429, %v423
    %vm574 = vcmask 523264
    %v576 = vsel %vm574, %v212, 0
    %578 = vmatprep.subr.bf16.mxu0 %v473
    %579 = vmatpush1.bf16.msra.mxu0 %v472
    %580 = vmatprep.subr.bf16.mxu0 %v467
    %581 = vmatpush1.bf16.msra.mxu0 %v466
    %582 = vmatprep.subr.bf16.mxu0 %v461
    %583 = vmatpush1.bf16.msra.mxu0 %v460
    %584 = vmatprep.subr.bf16.mxu0 %v455
    %585 = vmatpush1.bf16.msra.mxu0 %v454
    %586 = vmatprep.subr.bf16.mxu0 %v449
    %587 = vmatpush1.bf16.msra.mxu0 %v448
    %588 = vmatprep.subr.bf16.mxu0 %v443
    %589 = vmatpush1.bf16.msra.mxu0 %v442
    %590 = vmatprep.subr.bf16.mxu0 %v437
    %591 = vmatpush1.bf16.msra.mxu0 %v436
    %592 = vmatprep.subr.bf16.mxu0 %v431
    %593 = vmatpush1.bf16.msra.mxu0 %v430
    %594 = vmatprep.subr.bf16.mxu0 0
    %595 = vmatpush2.bf16.msra.mxu0 0
    %596 = vmatprep.subr.bf16.mxu0 0
    %597 = vmatpush2.bf16.msra.mxu0 0
    %598 = vmatprep.subr.bf16.mxu0 0
    %599 = vmatpush2.bf16.msra.mxu0 0
    %600 = vmatprep.subr.bf16.mxu0 0
    %601 = vmatpush2.bf16.msra.mxu0 0
    %602 = vmatprep.subr.bf16.mxu0 %v497
    %603 = vmatpush2.bf16.msra.mxu0 %v496
    %604 = vmatprep.subr.bf16.mxu0 %v491
    %605 = vmatpush2.bf16.msra.mxu0 %v490
    %606 = vmatprep.subr.bf16.mxu0 %v485
    %607 = vmatpush2.bf16.msra.mxu0 %v484
    %608 = vmatprep.subr.bf16.mxu0 %v479
    %609 = vmatpush2.bf16.msra.mxu0 %v478
    %610 = vmatprep.mubr.bf16.mxu0 %v576
    %611 = vmatmul.mubr.bf16.gmra.mxu0 %v211
    %v612 = vpop.f32.mrf.mxu0
    %v613 = vadd.f32 %v178, %v612
    %v614 = vpop.f32.mrf.mxu0
    %v615 = vadd.f32 %v182, %v614
    %v616 = vpop.f32.mrf.mxu0
    %v617 = vadd.f32 %v178, %v616
    %v618 = vpop.f32.mrf.mxu0
    %v619 = vadd.f32 %v182, %v618
    %620 = vdwg.mxu0
    %621 = vmatprep.subr.bf16.mxu0 %v475
    %622 = vmatpush1.bf16.msra.mxu0 %v474
    %623 = vmatprep.subr.bf16.mxu0 %v469
    %624 = vmatpush1.bf16.msra.mxu0 %v468
    %625 = vmatprep.subr.bf16.mxu0 %v463
    %626 = vmatpush1.bf16.msra.mxu0 %v462
    %627 = vmatprep.subr.bf16.mxu0 %v457
    %628 = vmatpush1.bf16.msra.mxu0 %v456
    %629 = vmatprep.subr.bf16.mxu0 %v451
    %630 = vmatpush1.bf16.msra.mxu0 %v450
    %631 = vmatprep.subr.bf16.mxu0 %v445
    %632 = vmatpush1.bf16.msra.mxu0 %v444
    %633 = vmatprep.subr.bf16.mxu0 %v439
    %634 = vmatpush1.bf16.msra.mxu0 %v438
    %635 = vmatprep.subr.bf16.mxu0 %v433
    %636 = vmatpush1.bf16.msra.mxu0 %v432
    %637 = vmatprep.subr.bf16.mxu0 0
    %638 = vmatpush2.bf16.msra.mxu0 0
    %639 = vmatprep.subr.bf16.mxu0 0
    %640 = vmatpush2.bf16.msra.mxu0 0
    %641 = vmatprep.subr.bf16.mxu0 0
    %642 = vmatpush2.bf16.msra.mxu0 0
    %643 = vmatprep.subr.bf16.mxu0 0
    %644 = vmatpush2.bf16.msra.mxu0 0
    %645 = vmatprep.subr.bf16.mxu0 %v499
    %646 = vmatpush2.bf16.msra.mxu0 %v498
    %647 = vmatprep.subr.bf16.mxu0 %v493
    %648 = vmatpush2.bf16.msra.mxu0 %v492
    %649 = vmatprep.subr.bf16.mxu0 %v487
    %650 = vmatpush2.bf16.msra.mxu0 %v486
    %651 = vmatprep.subr.bf16.mxu0 %v481
    %652 = vmatpush2.bf16.msra.mxu0 %v480
    %653 = vmatprep.mubr.bf16.mxu0 %v576
    %654 = vmatmul.mubr.bf16.gmra.mxu0 %v211
    %v655 = vpop.f32.mrf.mxu0
    %v656 = vadd.f32 %v186, %v655
    %v657 = vpop.f32.mrf.mxu0
    %v658 = vadd.f32 %v190, %v657
    %v659 = vpop.f32.mrf.mxu0
    %v660 = vadd.f32 %v186, %v659
    %v661 = vpop.f32.mrf.mxu0
    %v662 = vadd.f32 %v190, %v661
    %663 = vdwg.mxu0
    %664 = vmatprep.subr.bf16.mxu0 %v477
    %665 = vmatpush1.bf16.msra.mxu0 %v476
    %666 = vmatprep.subr.bf16.mxu0 %v471
    %667 = vmatpush1.bf16.msra.mxu0 %v470
    %668 = vmatprep.subr.bf16.mxu0 %v465
    %669 = vmatpush1.bf16.msra.mxu0 %v464
    %670 = vmatprep.subr.bf16.mxu0 %v459
    %671 = vmatpush1.bf16.msra.mxu0 %v458
    %672 = vmatprep.subr.bf16.mxu0 %v453
    %673 = vmatpush1.bf16.msra.mxu0 %v452
    %674 = vmatprep.subr.bf16.mxu0 %v447
    %675 = vmatpush1.bf16.msra.mxu0 %v446
    %676 = vmatprep.subr.bf16.mxu0 %v441
    %677 = vmatpush1.bf16.msra.mxu0 %v440
    %678 = vmatprep.subr.bf16.mxu0 %v435
    %679 = vmatpush1.bf16.msra.mxu0 %v434
    %680 = vmatprep.subr.bf16.mxu0 0
    %681 = vmatpush2.bf16.msra.mxu0 0
    %682 = vmatprep.subr.bf16.mxu0 0
    %683 = vmatpush2.bf16.msra.mxu0 0
    %684 = vmatprep.subr.bf16.mxu0 0
    %685 = vmatpush2.bf16.msra.mxu0 0
    %686 = vmatprep.subr.bf16.mxu0 0
    %687 = vmatpush2.bf16.msra.mxu0 0
    %688 = vmatprep.subr.bf16.mxu0 %v501
    %689 = vmatpush2.bf16.msra.mxu0 %v500
    %690 = vmatprep.subr.bf16.mxu0 %v495
    %691 = vmatpush2.bf16.msra.mxu0 %v494
    %692 = vmatprep.subr.bf16.mxu0 %v489
    %693 = vmatpush2.bf16.msra.mxu0 %v488
    %694 = vmatprep.subr.bf16.mxu0 %v483
    %695 = vmatpush2.bf16.msra.mxu0 %v482
    %696 = vmatprep.mubr.bf16.mxu0 %v576
    %697 = vmatmul.mubr.bf16.gmra.mxu0 %v211
    %v698 = vpop.f32.mrf.mxu0
    %v699 = vadd.f32 %v194, %v698
    %v700 = vpop.f32.mrf.mxu0
    %v701 = vadd.f32 %v198, %v700
    %v702 = vpop.f32.mrf.mxu0
    %v703 = vadd.f32 %v194, %v702
    %v704 = vpop.f32.mrf.mxu0
    %v705 = vadd.f32 %v198, %v704
    %706 = vdwg.mxu0
    %v707 = vld [vmem:[#allocation8] sm:$0xff]
    %v708 = vld [vmem:[#allocation8 + $0x8] sm:$0xff]
    %v709 = vld [vmem:[#allocation8 + $0x10] sm:$0xff]
    %v710 = vld [vmem:[#allocation8 + $0x18] sm:$0xff]
    %v711 = vld [vmem:[#allocation8 + $0x20] sm:$0xff]
    %v712 = vld [vmem:[#allocation8 + $0x28] sm:$0xff]
    %v713 = vld [vmem:[#allocation8 + $0x30] sm:$0xff]
    %v714 = vld [vmem:[#allocation8 + $0x38] sm:$0xff]
    %v715 = vld [vmem:[#allocation8 + $0x40] sm:$0xff]
    %v716 = vld [vmem:[#allocation8 + $0x48] sm:$0xff]
    %v717 = vld [vmem:[#allocation8 + $0x50] sm:$0xff]
    %v718 = vld [vmem:[#allocation8 + $0x58] sm:$0xff]
    %v719 = vld [vmem:[#allocation8 + $0x60] sm:$0xff]
    %v720 = vld [vmem:[#allocation8 + $0x68] sm:$0xff]
    %v721 = vld [vmem:[#allocation8 + $0x70] sm:$0xff]
    %v722 = vld [vmem:[#allocation8 + $0x78] sm:$0xff]
    %v723 = vld [vmem:[#allocation8 + $0x80] sm:$0xff]
    %v724 = vld [vmem:[#allocation8 + $0x88] sm:$0xff]
    %v725 = vld [vmem:[#allocation8 + $0x90] sm:$0xff]
    %v726 = vld [vmem:[#allocation8 + $0x98] sm:$0xff]
    %v727 = vld [vmem:[#allocation8 + $0xa0] sm:$0xff]
    %v728 = vld [vmem:[#allocation8 + $0xa8] sm:$0xff]
    %v729 = vld [vmem:[#allocation8 + $0xb0] sm:$0xff]
    %v730 = vld [vmem:[#allocation8 + $0xb8] sm:$0xff]
    %v731 = vld [vmem:[#allocation8 + $0xc0] sm:$0xff]
    %v732 = vld [vmem:[#allocation8 + $0xc8] sm:$0xff]
    %v733 = vld [vmem:[#allocation8 + $0xd0] sm:$0xff]
    %v734 = vld [vmem:[#allocation8 + $0xd8] sm:$0xff]
    %v735 = vld [vmem:[#allocation8 + $0xe0] sm:$0xff]
    %v736 = vld [vmem:[#allocation8 + $0xe8] sm:$0xff]
    %v737 = vld [vmem:[#allocation8 + $0xf0] sm:$0xff]
    %v738 = vld [vmem:[#allocation8 + $0xf8] sm:$0xff]
    %v739 = vld [vmem:[#allocation8 + $0x100] sm:$0xff]
    %v740 = vld [vmem:[#allocation8 + $0x108] sm:$0xff]
    %v741 = vld [vmem:[#allocation8 + $0x110] sm:$0xff]
    %v742 = vld [vmem:[#allocation8 + $0x118] sm:$0xff]
    %v743 = vld [vmem:[#allocation8 + $0x120] sm:$0xff]
    %v744 = vld [vmem:[#allocation8 + $0x128] sm:$0xff]
    %v745 = vld [vmem:[#allocation8 + $0x130] sm:$0xff]
    %v746 = vld [vmem:[#allocation8 + $0x138] sm:$0xff]
    %v747 = vld [vmem:[#allocation8 + $0x140] sm:$0xff]
    %v748 = vld [vmem:[#allocation8 + $0x148] sm:$0xff]
    %v749 = vld [vmem:[#allocation8 + $0x150] sm:$0xff]
    %v750 = vld [vmem:[#allocation8 + $0x158] sm:$0xff]
    %v751 = vld [vmem:[#allocation8 + $0x160] sm:$0xff]
    %v752 = vld [vmem:[#allocation8 + $0x168] sm:$0xff]
    %v753 = vld [vmem:[#allocation8 + $0x170] sm:$0xff]
    %v754 = vld [vmem:[#allocation8 + $0x178] sm:$0xff]
    %v803 = vunpack.c.l.b16 %v707
    %v804 = vunpack.c.h.b16 %v707
    %v805 = vunpack.c.l.b16 %v708
    %v806 = vunpack.c.h.b16 %v708
    %v807 = vunpack.c.l.b16 %v709
    %v808 = vunpack.c.h.b16 %v709
    %v809 = vunpack.c.l.b16 %v710
    %v810 = vunpack.c.h.b16 %v710
    %v811 = vunpack.c.l.b16 %v711
    %v812 = vunpack.c.h.b16 %v711
    %v813 = vunpack.c.l.b16 %v712
    %v814 = vunpack.c.h.b16 %v712
    %v815 = vunpack.c.l.b16 %v713
    %v816 = vunpack.c.h.b16 %v713
    %v817 = vunpack.c.l.b16 %v714
    %v818 = vunpack.c.h.b16 %v714
    %v819 = vunpack.c.l.b16 %v715
    %v820 = vunpack.c.h.b16 %v715
    %v821 = vunpack.c.l.b16 %v716
    %v822 = vunpack.c.h.b16 %v716
    %v823 = vunpack.c.l.b16 %v717
    %v824 = vunpack.c.h.b16 %v717
    %v825 = vunpack.c.l.b16 %v718
    %v826 = vunpack.c.h.b16 %v718
    %v827 = vunpack.c.l.b16 %v719
    %v828 = vunpack.c.h.b16 %v719
    %v829 = vunpack.c.l.b16 %v720
    %v830 = vunpack.c.h.b16 %v720
    %v831 = vunpack.c.l.b16 %v721
    %v832 = vunpack.c.h.b16 %v721
    %v833 = vunpack.c.l.b16 %v722
    %v834 = vunpack.c.h.b16 %v722
    %v835 = vunpack.c.l.b16 %v723
    %v836 = vunpack.c.h.b16 %v723
    %v837 = vunpack.c.l.b16 %v724
    %v838 = vunpack.c.h.b16 %v724
    %v839 = vunpack.c.l.b16 %v725
    %v840 = vunpack.c.h.b16 %v725
    %v841 = vunpack.c.l.b16 %v726
    %v842 = vunpack.c.h.b16 %v726
    %v843 = vunpack.c.l.b16 %v727
    %v844 = vunpack.c.h.b16 %v727
    %v845 = vunpack.c.l.b16 %v728
    %v846 = vunpack.c.h.b16 %v728
    %v847 = vunpack.c.l.b16 %v729
    %v848 = vunpack.c.h.b16 %v729
    %v849 = vunpack.c.l.b16 %v730
    %v850 = vunpack.c.h.b16 %v730
    %v851 = vunpack.c.l.b16 %v731
    %v852 = vunpack.c.h.b16 %v731
    %v853 = vunpack.c.l.b16 %v732
    %v854 = vunpack.c.h.b16 %v732
    %v855 = vunpack.c.l.b16 %v733
    %v856 = vunpack.c.h.b16 %v733
    %v857 = vunpack.c.l.b16 %v734
    %v858 = vunpack.c.h.b16 %v734
    %v859 = vunpack.c.l.b16 %v735
    %v860 = vunpack.c.h.b16 %v735
    %v861 = vunpack.c.l.b16 %v736
    %v862 = vunpack.c.h.b16 %v736
    %v863 = vunpack.c.l.b16 %v737
    %v864 = vunpack.c.h.b16 %v737
    %v865 = vunpack.c.l.b16 %v738
    %v866 = vunpack.c.h.b16 %v738
    %v867 = vunpack.c.l.b16 %v739
    %v868 = vunpack.c.h.b16 %v739
    %v869 = vunpack.c.l.b16 %v740
    %v870 = vunpack.c.h.b16 %v740
    %v871 = vunpack.c.l.b16 %v741
    %v872 = vunpack.c.h.b16 %v741
    %v873 = vunpack.c.l.b16 %v742
    %v874 = vunpack.c.h.b16 %v742
    %v875 = vunpack.c.l.b16 %v743
    %v876 = vunpack.c.h.b16 %v743
    %v877 = vunpack.c.l.b16 %v744
    %v878 = vunpack.c.h.b16 %v744
    %v879 = vunpack.c.l.b16 %v745
    %v880 = vunpack.c.h.b16 %v745
    %v881 = vunpack.c.l.b16 %v746
    %v882 = vunpack.c.h.b16 %v746
    %v883 = vunpack.c.l.b16 %v747
    %v884 = vunpack.c.h.b16 %v747
    %v885 = vunpack.c.l.b16 %v748
    %v886 = vunpack.c.h.b16 %v748
    %v887 = vunpack.c.l.b16 %v749
    %v888 = vunpack.c.h.b16 %v749
    %v889 = vunpack.c.l.b16 %v750
    %v890 = vunpack.c.h.b16 %v750
    %v891 = vunpack.c.l.b16 %v751
    %v892 = vunpack.c.h.b16 %v751
    %v893 = vunpack.c.l.b16 %v752
    %v894 = vunpack.c.h.b16 %v752
    %v895 = vunpack.c.l.b16 %v753
    %v896 = vunpack.c.h.b16 %v753
    %v897 = vunpack.c.l.b16 %v754
    %v898 = vunpack.c.h.b16 %v754
    %v899 = vpack.c.b16 %v807, %v803
    %v900 = vpack.c.b16 %v808, %v804
    %v901 = vpack.c.b16 %v809, %v805
    %v902 = vpack.c.b16 %v810, %v806
    %v903 = vpack.c.b16 %v815, %v811
    %v904 = vpack.c.b16 %v816, %v812
    %v905 = vpack.c.b16 %v817, %v813
    %v906 = vpack.c.b16 %v818, %v814
    %v907 = vpack.c.b16 %v823, %v819
    %v908 = vpack.c.b16 %v824, %v820
    %v909 = vpack.c.b16 %v825, %v821
    %v910 = vpack.c.b16 %v826, %v822
    %v911 = vpack.c.b16 %v831, %v827
    %v912 = vpack.c.b16 %v832, %v828
    %v913 = vpack.c.b16 %v833, %v829
    %v914 = vpack.c.b16 %v834, %v830
    %v915 = vpack.c.b16 %v839, %v835
    %v916 = vpack.c.b16 %v840, %v836
    %v917 = vpack.c.b16 %v841, %v837
    %v918 = vpack.c.b16 %v842, %v838
    %v919 = vpack.c.b16 %v847, %v843
    %v920 = vpack.c.b16 %v848, %v844
    %v921 = vpack.c.b16 %v849, %v845
    %v922 = vpack.c.b16 %v850, %v846
    %v923 = vpack.c.b16 %v855, %v851
    %v924 = vpack.c.b16 %v856, %v852
    %v925 = vpack.c.b16 %v857, %v853
    %v926 = vpack.c.b16 %v858, %v854
    %v927 = vpack.c.b16 %v863, %v859
    %v928 = vpack.c.b16 %v864, %v860
    %v929 = vpack.c.b16 %v865, %v861
    %v930 = vpack.c.b16 %v866, %v862
    %v931 = vpack.c.b16 %v871, %v867
    %v932 = vpack.c.b16 %v872, %v868
    %v933 = vpack.c.b16 %v873, %v869
    %v934 = vpack.c.b16 %v874, %v870
    %v935 = vpack.c.b16 %v879, %v875
    %v936 = vpack.c.b16 %v880, %v876
    %v937 = vpack.c.b16 %v881, %v877
    %v938 = vpack.c.b16 %v882, %v878
    %v939 = vpack.c.b16 %v887, %v883
    %v940 = vpack.c.b16 %v888, %v884
    %v941 = vpack.c.b16 %v889, %v885
    %v942 = vpack.c.b16 %v890, %v886
    %v943 = vpack.c.b16 %v895, %v891
    %v944 = vpack.c.b16 %v896, %v892
    %v945 = vpack.c.b16 %v897, %v893
    %v946 = vpack.c.b16 %v898, %v894
    %v996 = vsel %vm574, %v98, 0
    %998 = vmatprep.subr.bf16.mxu0 %v928
    %999 = vmatpush1.bf16.msra.mxu0 %v927
    %1000 = vmatprep.subr.bf16.mxu0 %v924
    %1001 = vmatpush1.bf16.msra.mxu0 %v923
    %1002 = vmatprep.subr.bf16.mxu0 %v920
    %1003 = vmatpush1.bf16.msra.mxu0 %v919
    %1004 = vmatprep.subr.bf16.mxu0 %v916
    %1005 = vmatpush1.bf16.msra.mxu0 %v915
    %1006 = vmatprep.subr.bf16.mxu0 %v912
    %1007 = vmatpush1.bf16.msra.mxu0 %v911
    %1008 = vmatprep.subr.bf16.mxu0 %v908
    %1009 = vmatpush1.bf16.msra.mxu0 %v907
    %1010 = vmatprep.subr.bf16.mxu0 %v904
    %1011 = vmatpush1.bf16.msra.mxu0 %v903
    %1012 = vmatprep.subr.bf16.mxu0 %v900
    %1013 = vmatpush1.bf16.msra.mxu0 %v899
    %1014 = vmatprep.subr.bf16.mxu0 0
    %1015 = vmatpush2.bf16.msra.mxu0 0
    %1016 = vmatprep.subr.bf16.mxu0 0
    %1017 = vmatpush2.bf16.msra.mxu0 0
    %1018 = vmatprep.subr.bf16.mxu0 0
    %1019 = vmatpush2.bf16.msra.mxu0 0
    %1020 = vmatprep.subr.bf16.mxu0 0
    %1021 = vmatpush2.bf16.msra.mxu0 0
    %1022 = vmatprep.subr.bf16.mxu0 %v944
    %1023 = vmatpush2.bf16.msra.mxu0 %v943
    %1024 = vmatprep.subr.bf16.mxu0 %v940
    %1025 = vmatpush2.bf16.msra.mxu0 %v939
    %1026 = vmatprep.subr.bf16.mxu0 %v936
    %1027 = vmatpush2.bf16.msra.mxu0 %v935
    %1028 = vmatprep.subr.bf16.mxu0 %v932
    %1029 = vmatpush2.bf16.msra.mxu0 %v931
    %1030 = vmatprep.mubr.bf16.mxu0 %v996
    %1031 = vmatmul.mubr.bf16.gmra.mxu0 %v97
    %v1032 = vpop.f32.mrf.mxu0
    %v1033 = vadd.f32 0.0, %v1032
    %v1034 = vpop.f32.mrf.mxu0
    %v1035 = vadd.f32 0.0, %v1034
    %v1036 = vpop.f32.mrf.mxu0
    %v1037 = vadd.f32 0.0, %v1036
    %v1038 = vpop.f32.mrf.mxu0
    %v1039 = vadd.f32 0.0, %v1038
    %1040 = vdwg.mxu0
    %1041 = vmatprep.subr.bf16.mxu0 %v930
    %1042 = vmatpush1.bf16.msra.mxu0 %v929
    %1043 = vmatprep.subr.bf16.mxu0 %v926
    %1044 = vmatpush1.bf16.msra.mxu0 %v925
    %1045 = vmatprep.subr.bf16.mxu0 %v922
    %1046 = vmatpush1.bf16.msra.mxu0 %v921
    %1047 = vmatprep.subr.bf16.mxu0 %v918
    %1048 = vmatpush1.bf16.msra.mxu0 %v917
    %1049 = vmatprep.subr.bf16.mxu0 %v914
    %1050 = vmatpush1.bf16.msra.mxu0 %v913
    %1051 = vmatprep.subr.bf16.mxu0 %v910
    %1052 = vmatpush1.bf16.msra.mxu0 %v909
    %1053 = vmatprep.subr.bf16.mxu0 %v906
    %1054 = vmatpush1.bf16.msra.mxu0 %v905
    %1055 = vmatprep.subr.bf16.mxu0 %v902
    %1056 = vmatpush1.bf16.msra.mxu0 %v901
    %1057 = vmatprep.subr.bf16.mxu0 0
    %1058 = vmatpush2.bf16.msra.mxu0 0
    %1059 = vmatprep.subr.bf16.mxu0 0
    %1060 = vmatpush2.bf16.msra.mxu0 0
    %1061 = vmatprep.subr.bf16.mxu0 0
    %1062 = vmatpush2.bf16.msra.mxu0 0
    %1063 = vmatprep.subr.bf16.mxu0 0
    %1064 = vmatpush2.bf16.msra.mxu0 0
    %1065 = vmatprep.subr.bf16.mxu0 %v946
    %1066 = vmatpush2.bf16.msra.mxu0 %v945
    %1067 = vmatprep.subr.bf16.mxu0 %v942
    %1068 = vmatpush2.bf16.msra.mxu0 %v941
    %1069 = vmatprep.subr.bf16.mxu0 %v938
    %1070 = vmatpush2.bf16.msra.mxu0 %v937
    %1071 = vmatprep.subr.bf16.mxu0 %v934
    %1072 = vmatpush2.bf16.msra.mxu0 %v933
    %1073 = vmatprep.mubr.bf16.mxu0 %v996
    %1074 = vmatmul.mubr.bf16.gmra.mxu0 %v97
    %v1075 = vpop.f32.mrf.mxu0
    %v1076 = vadd.f32 0.0, %v1075
    %v1077 = vpop.f32.mrf.mxu0
    %v1078 = vadd.f32 0.0, %v1077
    %v1079 = vpop.f32.mrf.mxu0
    %v1080 = vadd.f32 0.0, %v1079
    %v1081 = vpop.f32.mrf.mxu0
    %v1082 = vadd.f32 0.0, %v1081
    %1083 = vdwg.mxu0
    %v1084 = vadd.f32 %v613, %v1033
    %v1085 = vadd.f32 %v615, %v1035
    %v1086 = vadd.f32 %v617, %v1037
    %v1087 = vadd.f32 %v619, %v1039
    %v1088 = vxor.u32 %v1084, 2147483648
    %v1089 = vxor.u32 %v1085, 2147483648
    %v1090 = vxor.u32 %v1086, 2147483648
    %v1091 = vxor.u32 %v1087, 2147483648
    %v1092 = vmul.f32 %v1088, 1.442695
    %v1093 = vpow.pop %v1092
    %v1094 = vmul.f32 %v1089, 1.442695
    %v1095 = vpow.pop %v1094
    %v1096 = vmul.f32 %v1090, 1.442695
    %v1097 = vpow.pop %v1096
    %v1098 = vmul.f32 %v1091, 1.442695
    %v1099 = vpow.pop %v1098
    %v1100 = vadd.f32 %v1093, 1.0
    %v1101 = vadd.f32 %v1095, 1.0
    %v1102 = vadd.f32 %v1097, 1.0
    %v1103 = vadd.f32 %v1099, 1.0
    %v1104 = vrcp.pop %v1100
    %v1105 = vmul.f32 1.0, %v1104
    %v1106 = vrcp.pop %v1101
    %v1107 = vmul.f32 1.0, %v1106
    %v1108 = vrcp.pop %v1102
    %v1109 = vmul.f32 1.0, %v1108
    %v1110 = vrcp.pop %v1103
    %v1111 = vmul.f32 1.0, %v1110
    %v1112 = vadd.f32 %v656, %v1076
    %v1113 = vadd.f32 %v658, %v1078
    %v1114 = vadd.f32 %v660, %v1080
    %v1115 = vadd.f32 %v662, %v1082
    %v1116 = vxor.u32 %v1112, 2147483648
    %v1117 = vxor.u32 %v1113, 2147483648
    %v1118 = vxor.u32 %v1114, 2147483648
    %v1119 = vxor.u32 %v1115, 2147483648
    %v1120 = vmul.f32 %v1116, 1.442695
    %v1121 = vpow.pop %v1120
    %v1122 = vmul.f32 %v1117, 1.442695
    %v1123 = vpow.pop %v1122
    %v1124 = vmul.f32 %v1118, 1.442695
    %v1125 = vpow.pop %v1124
    %v1126 = vmul.f32 %v1119, 1.442695
    %v1127 = vpow.pop %v1126
    %v1128 = vadd.f32 %v1121, 1.0
    %v1129 = vadd.f32 %v1123, 1.0
    %v1130 = vadd.f32 %v1125, 1.0
    %v1131 = vadd.f32 %v1127, 1.0
    %v1132 = vrcp.pop %v1128
    %v1133 = vmul.f32 1.0, %v1132
    %v1134 = vrcp.pop %v1129
    %v1135 = vmul.f32 1.0, %v1134
    %v1136 = vrcp.pop %v1130
    %v1137 = vmul.f32 1.0, %v1136
    %v1138 = vrcp.pop %v1131
    %v1139 = vmul.f32 1.0, %v1138
    %v1140 = vmul.f32 %v1105, %v93
    %v1141 = vmul.f32 %v1107, %v94
    %v1142 = vmul.f32 %v1109, %v95
    %v1143 = vmul.f32 %v1111, %v96
    %v1144 = vpack.c.bf16 %v1142, %v1140
    %v1145 = vpack.c.bf16 %v1143, %v1141
    %v1146 = vld [vmem:[#allocation10] sm:$0xff]
    %v1147 = vld [vmem:[#allocation10 + $0x8] sm:$0xff]
    %v1148 = vld [vmem:[#allocation10 + $0x10] sm:$0xff]
    %v1149 = vld [vmem:[#allocation10 + $0x18] sm:$0xff]
    %v1150 = vld [vmem:[#allocation10 + $0x20] sm:$0xff]
    %v1151 = vld [vmem:[#allocation10 + $0x28] sm:$0xff]
    %v1152 = vld [vmem:[#allocation10 + $0x30] sm:$0xff]
    %v1153 = vld [vmem:[#allocation10 + $0x38] sm:$0xff]
    %v1154 = vld [vmem:[#allocation10 + $0x40] sm:$0xff]
    %v1155 = vld [vmem:[#allocation10 + $0x48] sm:$0xff]
    %v1156 = vld [vmem:[#allocation10 + $0x50] sm:$0xff]
    %v1157 = vld [vmem:[#allocation10 + $0x58] sm:$0xff]
    %v1158 = vld [vmem:[#allocation10 + $0x60] sm:$0xff]
    %v1159 = vld [vmem:[#allocation10 + $0x68] sm:$0xff]
    %v1160 = vld [vmem:[#allocation10 + $0x70] sm:$0xff]
    %v1161 = vld [vmem:[#allocation10 + $0x78] sm:$0xff]
    %v1162 = vld [vmem:[#allocation10 + $0x80] sm:$0xff]
    %v1163 = vld [vmem:[#allocation10 + $0x88] sm:$0xff]
    %v1164 = vld [vmem:[#allocation10 + $0x90] sm:$0xff]
    %v1165 = vld [vmem:[#allocation10 + $0x98] sm:$0xff]
    %v1166 = vld [vmem:[#allocation10 + $0xa0] sm:$0xff]
    %v1167 = vld [vmem:[#allocation10 + $0xa8] sm:$0xff]
    %v1168 = vld [vmem:[#allocation10 + $0xb0] sm:$0xff]
    %v1169 = vld [vmem:[#allocation10 + $0xb8] sm:$0xff]
    %v1194 = vunpack.c.l.b16 %v1146
    %v1195 = vunpack.c.h.b16 %v1146
    %v1196 = vunpack.c.l.b16 %v1147
    %v1197 = vunpack.c.h.b16 %v1147
    %v1198 = vunpack.c.l.b16 %v1148
    %v1199 = vunpack.c.h.b16 %v1148
    %v1200 = vunpack.c.l.b16 %v1149
    %v1201 = vunpack.c.h.b16 %v1149
    %v1202 = vunpack.c.l.b16 %v1150
    %v1203 = vunpack.c.h.b16 %v1150
    %v1204 = vunpack.c.l.b16 %v1151
    %v1205 = vunpack.c.h.b16 %v1151
    %v1206 = vunpack.c.l.b16 %v1152
    %v1207 = vunpack.c.h.b16 %v1152
    %v1208 = vunpack.c.l.b16 %v1153
    %v1209 = vunpack.c.h.b16 %v1153
    %v1210 = vunpack.c.l.b16 %v1154
    %v1211 = vunpack.c.h.b16 %v1154
    %v1212 = vunpack.c.l.b16 %v1155
    %v1213 = vunpack.c.h.b16 %v1155
    %v1214 = vunpack.c.l.b16 %v1156
    %v1215 = vunpack.c.h.b16 %v1156
    %v1216 = vunpack.c.l.b16 %v1157
    %v1217 = vunpack.c.h.b16 %v1157
    %v1218 = vunpack.c.l.b16 %v1158
    %v1219 = vunpack.c.h.b16 %v1158
    %v1220 = vunpack.c.l.b16 %v1159
    %v1221 = vunpack.c.h.b16 %v1159
    %v1222 = vunpack.c.l.b16 %v1160
    %v1223 = vunpack.c.h.b16 %v1160
    %v1224 = vunpack.c.l.b16 %v1161
    %v1225 = vunpack.c.h.b16 %v1161
    %v1226 = vunpack.c.l.b16 %v1162
    %v1227 = vunpack.c.h.b16 %v1162
    %v1228 = vunpack.c.l.b16 %v1163
    %v1229 = vunpack.c.h.b16 %v1163
    %v1230 = vunpack.c.l.b16 %v1164
    %v1231 = vunpack.c.h.b16 %v1164
    %v1232 = vunpack.c.l.b16 %v1165
    %v1233 = vunpack.c.h.b16 %v1165
    %v1234 = vunpack.c.l.b16 %v1166
    %v1235 = vunpack.c.h.b16 %v1166
    %v1236 = vunpack.c.l.b16 %v1167
    %v1237 = vunpack.c.h.b16 %v1167
    %v1238 = vunpack.c.l.b16 %v1168
    %v1239 = vunpack.c.h.b16 %v1168
    %v1240 = vunpack.c.l.b16 %v1169
    %v1241 = vunpack.c.h.b16 %v1169
    %v1242 = vpack.c.b16 %v1196, %v1194
    %v1243 = vpack.c.b16 %v1197, %v1195
    %v1244 = vpack.c.b16 %v1200, %v1198
    %v1245 = vpack.c.b16 %v1201, %v1199
    %v1246 = vpack.c.b16 %v1204, %v1202
    %v1247 = vpack.c.b16 %v1205, %v1203
    %v1248 = vpack.c.b16 %v1208, %v1206
    %v1249 = vpack.c.b16 %v1209, %v1207
    %v1250 = vpack.c.b16 %v1212, %v1210
    %v1251 = vpack.c.b16 %v1213, %v1211
    %v1252 = vpack.c.b16 %v1216, %v1214
    %v1253 = vpack.c.b16 %v1217, %v1215
    %v1254 = vpack.c.b16 %v1220, %v1218
    %v1255 = vpack.c.b16 %v1221, %v1219
    %v1256 = vpack.c.b16 %v1224, %v1222
    %v1257 = vpack.c.b16 %v1225, %v1223
    %v1258 = vpack.c.b16 %v1228, %v1226
    %v1259 = vpack.c.b16 %v1229, %v1227
    %v1260 = vpack.c.b16 %v1232, %v1230
    %v1261 = vpack.c.b16 %v1233, %v1231
    %v1262 = vpack.c.b16 %v1236, %v1234
    %v1263 = vpack.c.b16 %v1237, %v1235
    %v1264 = vpack.c.b16 %v1240, %v1238
    %v1265 = vpack.c.b16 %v1241, %v1239
    %v1291 = vsel %vm574, %v1145, 0
    %1293 = vmatprep.subr.bf16.mxu0 %v1257
    %1294 = vmatpush1.bf16.msra.mxu0 %v1256
    %1295 = vmatprep.subr.bf16.mxu0 %v1255
    %1296 = vmatpush1.bf16.msra.mxu0 %v1254
    %1297 = vmatprep.subr.bf16.mxu0 %v1253
    %1298 = vmatpush1.bf16.msra.mxu0 %v1252
    %1299 = vmatprep.subr.bf16.mxu0 %v1251
    %1300 = vmatpush1.bf16.msra.mxu0 %v1250
    %1301 = vmatprep.subr.bf16.mxu0 %v1249
    %1302 = vmatpush1.bf16.msra.mxu0 %v1248
    %1303 = vmatprep.subr.bf16.mxu0 %v1247
    %1304 = vmatpush1.bf16.msra.mxu0 %v1246
    %1305 = vmatprep.subr.bf16.mxu0 %v1245
    %1306 = vmatpush1.bf16.msra.mxu0 %v1244
    %1307 = vmatprep.subr.bf16.mxu0 %v1243
    %1308 = vmatpush1.bf16.msra.mxu0 %v1242
    %1309 = vmatprep.subr.bf16.mxu0 0
    %1310 = vmatpush2.bf16.msra.mxu0 0
    %1311 = vmatprep.subr.bf16.mxu0 0
    %1312 = vmatpush2.bf16.msra.mxu0 0
    %1313 = vmatprep.subr.bf16.mxu0 0
    %1314 = vmatpush2.bf16.msra.mxu0 0
    %1315 = vmatprep.subr.bf16.mxu0 0
    %1316 = vmatpush2.bf16.msra.mxu0 0
    %1317 = vmatprep.subr.bf16.mxu0 %v1265
    %1318 = vmatpush2.bf16.msra.mxu0 %v1264
    %1319 = vmatprep.subr.bf16.mxu0 %v1263
    %1320 = vmatpush2.bf16.msra.mxu0 %v1262
    %1321 = vmatprep.subr.bf16.mxu0 %v1261
    %1322 = vmatpush2.bf16.msra.mxu0 %v1260
    %1323 = vmatprep.subr.bf16.mxu0 %v1259
    %1324 = vmatpush2.bf16.msra.mxu0 %v1258
    %1325 = vmatprep.mubr.bf16.mxu0 %v1291
    %1326 = vmatmul.mubr.bf16.gmra.mxu0 %v1144
    %v1327 = vpop.f32.mrf.mxu0
    %v1328 = vadd.f32 0.0, %v1327
    %v1329 = vpop.f32.mrf.mxu0
    %v1330 = vadd.f32 0.0, %v1329
    %v1331 = vpop.f32.mrf.mxu0
    %v1332 = vadd.f32 0.0, %v1331
    %v1333 = vpop.f32.mrf.mxu0
    %v1334 = vadd.f32 0.0, %v1333
    %1335 = vdwg.mxu0
    %v1336 = vadd.f32 %v699, %v1328
    %v1337 = vadd.f32 %v701, %v1330
    %v1338 = vadd.f32 %v703, %v1332
    %v1339 = vadd.f32 %v705, %v1334
    %v1340 = vtanh.pop %v1336
    %v1341 = vtanh.pop %v1337
    %v1342 = vtanh.pop %v1338
    %v1343 = vtanh.pop %v1339
    %v1344 = vsub.f32 1.0, %v1133
    %v1345 = vsub.f32 1.0, %v1135
    %v1346 = vsub.f32 1.0, %v1137
    %v1347 = vsub.f32 1.0, %v1139
    %v1348 = vmul.f32 %v1344, %v93
    %v1349 = vmul.f32 %v1345, %v94
    %v1350 = vmul.f32 %v1346, %v95
    %v1351 = vmul.f32 %v1347, %v96
    %v1352 = vmul.f32 %v1133, %v1340
    %v1353 = vmul.f32 %v1135, %v1341
    %v1354 = vmul.f32 %v1137, %v1342
    %v1355 = vmul.f32 %v1139, %v1343
    %v1356 = vadd.f32 %v1348, %v1352
    %v1357 = vadd.f32 %v1349, %v1353
    %v1358 = vadd.f32 %v1350, %v1354
    %v1359 = vadd.f32 %v1351, %v1355
    %1360 = vst [vmem:[#allocation11] sm:$0xff] %v1356
    %1361 = vst.msk [vmem:[#allocation11 + $0x8] sm:$0xff] %vm574, %v1357
    %1362 = vst [vmem:[#allocation11 + $0x10] sm:$0xff] %v1358
    %1363 = vst.msk [vmem:[#allocation11 + $0x18] sm:$0xff] %vm574, %v1359
    // Predicated region
    $region46: #{tpu_custom_call.1} parent=1 // pred_check
      _
    $region47: #{tpu_custom_call.1} parent=1 // pred_check_branch
      %1365 = sbr.rel (0) target = $region49
    $region48: #{tpu_custom_call.1} parent=1 // pred_region
      %s1367 = ssub.s32 512, 512
      %1368 = vsyncadd [#allocation4], %s1367
      %s1369 = sshll.u32 [#allocation11], 4
      %s1370 = int_to_ptr.vmem [resolvable:$true] %s1369
      %1375 = dma.vmem_to_hbm [thread:$0]  %s1370, 512, %s6, [#allocation4], 256, 256, 16
    $region49: #{tpu_custom_call.1} parent=1 // pred_fallthru
      _
    // Predicated region
    $region50: #{tpu_custom_call.1} parent=1 // pred_check
      _
    $region51: #{tpu_custom_call.1} parent=1 // pred_check_branch
      %1377 = sbr.rel (0) target = $region53
    $region52: #{tpu_custom_call.1} parent=1 // pred_region
      %1378 = dma.done [#allocation4], 512
    $region53: #{tpu_custom_call.1} parent=1 // pred_fallthru
      _
    %1379 = vsyncpa [#allocation3], 1
    %1380 = vsyncpa [#allocation6], 1
    %1381 = vsyncpa [#allocation9], 1
    %1382 = vsyncpa [#allocation4], 1

</llo_original>
